<compile_context>
chip_gen: v5e
topology: v5e:2x2
jax: 0.10.0
libtpu: 0.0.40
codegen_flags: <defaults>
</compile_context>

<pallas_src>
import functools
import math

import jax
import jax.numpy as jnp
from jax.experimental import pallas as pl
from jax.experimental.pallas import tpu as pltpu

_ACC_W = 512                      # lane width of the persistent accumulators
_VMEM_LIMIT = 32 * 1024 * 1024    # explicit scoped-VMEM limit (v5e default is 16 MiB)


def _device_kind():
    try:
        return jax.devices()[0].device_kind.lower()
    except Exception:
        return ""


def _is_v7x():
    k = _device_kind()
    return ("v7" in k) or ("7x" in k)


def _eb_partial_sum_kernel(x_ref, y_ref, ax_ref, ay_ref, *,
                           acc_w, steps_per_split, valid_cols,
                           square_log, eps):
    """One grid step: mask the (possibly out-of-bounds) tail, accumulate row sums."""
    s = pl.program_id(0)              # column-range split ("parallel", per-TC on v7x)
    k = pl.program_id(1)              # streaming / reduction step ("arbitrary")

    @pl.when(k == 0)
    def _init():
        ax_ref[...] = jnp.zeros_like(ax_ref)
        ay_ref[...] = jnp.zeros_like(ay_ref)

    rows, tile_n = x_ref.shape
    n_chunks = tile_n // acc_w
    base = (s * steps_per_split + k) * tile_n          # global column offset of block

    # Hoisted once per grid step; per-chunk offset is a cheap broadcast add (VPU).
    col_iota = jax.lax.broadcasted_iota(jnp.int32, (rows, acc_w), 1)

    def accumulate(c, carry):
        start = c * acc_w
        if not isinstance(start, int):
            start = pl.multiple_of(start, acc_w)
        vx = x_ref[:, pl.ds(start, acc_w)].astype(jnp.float32)
        vy = y_ref[:, pl.ds(start, acc_w)].astype(jnp.float32)
        valid = (col_iota + (base + c * acc_w)) < valid_cols
        if square_log:
            # Select AFTER the log: exact zero contribution for masked lanes, and
            # NaN/Inf from garbage tail data cannot leak through the select.
            # NOTE: one log/element through the single EUP slot may make the
            # 'bright' path EUP-bound on v6e/v7x; a bitcast-exponent + VPU
            # polynomial log would offload it — kept exact & simple here.
            vx = jnp.where(valid, jnp.log(vx + eps), 0.0)
            vy = jnp.where(valid, jnp.log(vy + eps), 0.0)
        else:
            vx = jnp.where(valid, vx, 0.0)
            vy = jnp.where(valid, vy, 0.0)
        ax_ref[...] += vx
        ay_ref[...] += vy
        return carry

    if n_chunks <= 8:
        for c in range(n_chunks):                      # short: fully unroll
            accumulate(c, 0)
    else:                                              # long: bounded unroll
        jax.lax.fori_loop(0, n_chunks, accumulate, 0,
                          unroll=math.gcd(n_chunks, 8))


def eb_loss(x, y, loss_type="mean", norm="l1", target_block_bytes=None):
    """EBLoss.forward(x, y) for NCHW tensors of identical shape -> scalar loss."""
    assert x.shape == y.shape and x.ndim >= 2
    eps = 1e-6
    square_log = (loss_type != "mean")
    l2 = (norm != "l1")

    B = x.shape[0]
    N = math.prod(x.shape[1:])

    # ---- sublane packing: free contiguous reshape only (no padded HBM copy). ----
    # Small batches: split each sample across G rows (G | N) so tiles use all 8
    # sublanes.  B >= 8: rows are already plentiful, keep rows long (G = 1).
    if B >= 8:
        G = 1
    else:
        G = 1
        for g in (8, 4, 2):
            if N % g == 0:
                G = g
                break
    b_rows = B * G
    row_len = N // G
    xf = x.reshape(b_rows, row_len)
    yf = y.reshape(b_rows, row_len)

    itemsize = jnp.dtype(x.dtype).itemsize
    acc_w = _ACC_W

    # ---- tile size: large blocks amortize the ~0.35us/grid-step overhead. ----
    if target_block_bytes is None:
        # ~2 MiB/input already hits the HBM roofline on v5e/v6e; v7x (~3.2 TB/s)
        # wants ~4 MiB.  2 inputs x 2 pipeline buffers stays well under 32 MiB.
        target_block_bytes = (4 << 20) if _is_v7x() else (2 << 20)
    tile_n = max(acc_w,
                 (target_block_bytes // (b_rows * itemsize)) // acc_w * acc_w)
    # Keep each DMA'd block row >= ~8 KiB contiguous when the VMEM budget allows.
    if b_rows * 2048 * itemsize * 4 <= (24 << 20):
        tile_n = max(tile_n, 2048)
    # Never stream past the (rounded-up) row; the in-kernel mask handles the tail.
    tile_n = min(tile_n, pl.cdiv(row_len, acc_w) * acc_w)
    tile_n = max(tile_n, acc_w)
    # Hard cap so 2 inputs x 2 buffers fit the explicit 32 MiB scoped-VMEM limit.
    max_block_bytes = 6 << 20
    if b_rows * tile_n * itemsize > max_block_bytes:
        tile_n = max(acc_w,
                     (max_block_bytes // (b_rows * itemsize)) // acc_w * acc_w)

    n_steps_total = pl.cdiv(row_len, tile_n)

    # ---- optional 2-TensorCore split (v7x): shard the column range across TCs.
    # Only when the step count splits evenly, so no block start is ever fully OOB.
    num_splits = 1
    if _is_v7x() and n_steps_total >= 2 and n_steps_total % 2 == 0:
        num_splits = 2
    n_steps = n_steps_total // num_splits

    kernel = functools.partial(
        _eb_partial_sum_kernel,
        acc_w=acc_w, steps_per_split=n_steps, valid_cols=row_len,
        square_log=square_log, eps=eps)

    acc_shape = jax.ShapeDtypeStruct((num_splits, b_rows, acc_w), jnp.float32)
    in_spec = pl.BlockSpec((b_rows, tile_n), lambda s, k: (0, s * n_steps + k))
    out_spec = pl.BlockSpec((None, b_rows, acc_w), lambda s, k: (s, 0, 0))

    acc_x, acc_y = pl.pallas_call(
        kernel,
        out_shape=(acc_shape, acc_shape),
        grid=(num_splits, n_steps),
        in_specs=[in_spec, in_spec],
        out_specs=(out_spec, out_spec),
        compiler_params=pltpu.CompilerParams(
            dimension_semantics=("parallel", "arbitrary"),
            vmem_limit_bytes=_VMEM_LIMIT),
    )(xf, yf)

    # ---- tiny XLA epilogue: combine partials, transfer, metric, batch mean. ----
    inv_n = jnp.float32(1.0 / N)
    tx = acc_x.sum(axis=(0, 2)).reshape(B, G).sum(axis=1) * inv_n
    ty = acc_y.sum(axis=(0, 2)).reshape(B, G).sum(axis=1) * inv_n
    if square_log:
        tx = tx * tx
        ty = ty * ty
    d = tx - ty
    e = d * d if l2 else jnp.abs(d)
    return jnp.mean(e)


def _eb_loss_ref(x, y, loss_type="mean", norm="l1"):
    eps = 1e-6
    if loss_type == "mean":
        tx = jnp.mean(x, axis=(1, 2, 3))
        ty = jnp.mean(y, axis=(1, 2, 3))
    else:
        tx = jnp.square(jnp.mean(jnp.log(x + eps), axis=(1, 2, 3)))
        ty = jnp.square(jnp.mean(jnp.log(y + eps), axis=(1, 2, 3)))
    d = tx - ty
    e = jnp.abs(d) if norm == "l1" else d * d
    return jnp.mean(e)


if __name__ == "__main__":
    key = jax.random.PRNGKey(0)
    kx, ky = jax.random.split(key)

    # Small NCHW inputs consistent with an image loss: batch=2, channels=4, 16x16.
    x = jax.random.uniform(kx, (2, 4, 16, 16), dtype=jnp.float32)
    y = jax.random.uniform(ky, (2, 4, 16, 16), dtype=jnp.float32)

    # Default module config: 'mean' transfer + L1 content loss.
    out = jax.block_until_ready(eb_loss(x, y, loss_type="mean", norm="l1"))
    ref = _eb_loss_ref(x, y, loss_type="mean", norm="l1")
    assert jnp.allclose(out, ref, atol=1e-5, rtol=1e-4), (out, ref)

    # 'bright' (square-log-mean) transfer + L2 variant.
    out2 = jax.block_until_ready(eb_loss(x, y, loss_type="bright", norm="l2"))
    ref2 = _eb_loss_ref(x, y, loss_type="bright", norm="l2")
    assert jnp.allclose(out2, ref2, atol=1e-5, rtol=1e-4), (out2, ref2)

    # Moderately larger case exercising the fori_loop chunk path.
    kx2, ky2 = jax.random.split(jax.random.PRNGKey(1))
    x3 = jax.random.uniform(kx2, (2, 16, 64, 64), dtype=jnp.float32)
    y3 = jax.random.uniform(ky2, (2, 16, 64, 64), dtype=jnp.float32)
    out3 = jax.block_until_ready(eb_loss(x3, y3, loss_type="mean", norm="l2"))
    ref3 = _eb_loss_ref(x3, y3, loss_type="mean", norm="l2")
    assert jnp.allclose(out3, ref3, atol=1e-5, rtol=1e-4), (out3, ref3)

    # Same data with a small forced block size: exercises the multi-step
    # streaming accumulation (k > 0) path on the 'bright' transfer.
    out4 = jax.block_until_ready(
        eb_loss(x3, y3, loss_type="bright", norm="l1",
                target_block_bytes=1 << 18))
    ref4 = _eb_loss_ref(x3, y3, loss_type="bright", norm="l1")
    assert jnp.allclose(out4, ref4, atol=1e-5, rtol=1e-4), (out4, ref4)

    print("KERNEL_OK")
</pallas_src>

<mosaic_0001>
module attributes {stable_mosaic.version = 11 : i64} {
  func.func @_eb_partial_sum_kernel(%arg0: i32, %arg1: i32, %arg2: memref<16x512xf32, #tpu.memory_space<vmem>>, %arg3: memref<16x512xf32, #tpu.memory_space<vmem>>, %arg4: memref<1x16x512xf32, #tpu.memory_space<vmem>>, %arg5: memref<1x16x512xf32, #tpu.memory_space<vmem>>) attributes {dimension_semantics = [#tpu.dimension_semantics<parallel>, #tpu.dimension_semantics<arbitrary>], iteration_bounds = array<i64: 1, 1>, scalar_prefetch = 0 : i64, scratch_operands = 0 : i64, tpu.core_type = #tpu.core_type<tc>, window_params = [{transform_indices = @transform_0, window_bounds = array<i64: 16, 512>}, {transform_indices = @transform_1, window_bounds = array<i64: 16, 512>}, {transform_indices = @transform_2, window_bounds = array<i64: 1, 16, 512>}, {transform_indices = @transform_3, window_bounds = array<i64: 1, 16, 512>}]} {
    %c0_i32 = arith.constant 0 : i32
    %0 = arith.cmpi eq, %arg1, %c0_i32 : i32
    %1 = arith.extui %0 : i1 to i32
    %c0_i32_0 = arith.constant 0 : i32
    %2 = arith.cmpi ne, %1, %c0_i32_0 : i32
    scf.if %2 {
      %cst_18 = arith.constant 0.000000e+00 : f32
      %30 = vector.broadcast %cst_18 : f32 to vector<16x512xf32>
      %c0_19 = arith.constant 0 : index
      %c0_20 = arith.constant 0 : index
      %c0_21 = arith.constant 0 : index
      %31 = vector.load %arg4[%c0_19, %c0_20, %c0_21] : memref<1x16x512xf32, #tpu.memory_space<vmem>>, vector<1x16x512xf32>
      %32 = vector.shape_cast %31 : vector<1x16x512xf32> to vector<16x512xf32>
      %33 = vector.shape_cast %30 : vector<16x512xf32> to vector<1x16x512xf32>
      tpu.vector_store %arg4[%c0_19, %c0_20, %c0_21], %33 {strides = array<i32>} : memref<1x16x512xf32, #tpu.memory_space<vmem>>, vector<1x16x512xf32>,
      %cst_22 = arith.constant 0.000000e+00 : f32
      %34 = vector.broadcast %cst_22 : f32 to vector<16x512xf32>
      %c0_23 = arith.constant 0 : index
      %c0_24 = arith.constant 0 : index
      %c0_25 = arith.constant 0 : index
      %35 = vector.load %arg5[%c0_23, %c0_24, %c0_25] : memref<1x16x512xf32, #tpu.memory_space<vmem>>, vector<1x16x512xf32>
      %36 = vector.shape_cast %35 : vector<1x16x512xf32> to vector<16x512xf32>
      %37 = vector.shape_cast %34 : vector<16x512xf32> to vector<1x16x512xf32>
      tpu.vector_store %arg5[%c0_23, %c0_24, %c0_25], %37 {strides = array<i32>} : memref<1x16x512xf32, #tpu.memory_space<vmem>>, vector<1x16x512xf32>,
    } else {
    }
    %c1_i32 = arith.constant 1 : i32
    %3 = arith.muli %arg0, %c1_i32 : i32
    %4 = arith.addi %3, %arg1 : i32
    %c512_i32 = arith.constant 512 : i32
    %5 = arith.muli %4, %c512_i32 : i32
    %6 = tpu.iota {dimensions = array<i32: 1>} : vector<16x512xi32>
    %c0 = arith.constant 0 : index
    %c0_1 = arith.constant 0 : index
    %7 = vector.load %arg2[%c0, %c0_1] : memref<16x512xf32, #tpu.memory_space<vmem>>, vector<16x512xf32>
    %c0_2 = arith.constant 0 : index
    %c0_3 = arith.constant 0 : index
    %8 = vector.load %arg3[%c0_2, %c0_3] : memref<16x512xf32, #tpu.memory_space<vmem>>, vector<16x512xf32>
    %c0_i32_4 = arith.constant 0 : i32
    %9 = arith.addi %5, %c0_i32_4 : i32
    %10 = vector.broadcast %9 : i32 to vector<16x512xi32>
    %11 = arith.addi %6, %10 : vector<16x512xi32>
    %c128_i32 = arith.constant 128 : i32
    %12 = vector.broadcast %c128_i32 : i32 to vector<16x512xi32>
    %13 = arith.cmpi slt, %11, %12 : vector<16x512xi32>
    %cst = arith.constant 0.000000e+00 : f32
    %14 = vector.broadcast %cst : f32 to vector<16x512xf32>
    %15 = arith.select %13, %7, %14 : vector<16x512xi1>, vector<16x512xf32>
    %cst_5 = arith.constant 0.000000e+00 : f32
    %16 = vector.broadcast %cst_5 : f32 to vector<16x512xf32>
    %17 = arith.select %13, %8, %16 : vector<16x512xi1>, vector<16x512xf32>
    %c0_6 = arith.constant 0 : index
    %c0_7 = arith.constant 0 : index
    %c0_8 = arith.constant 0 : index
    %18 = vector.load %arg4[%c0_6, %c0_7, %c0_8] : memref<1x16x512xf32, #tpu.memory_space<vmem>>, vector<1x16x512xf32>
    %19 = vector.shape_cast %18 : vector<1x16x512xf32> to vector<16x512xf32>
    %20 = arith.addf %19, %15 : vector<16x512xf32>
    %c0_9 = arith.constant 0 : index
    %c0_10 = arith.constant 0 : index
    %c0_11 = arith.constant 0 : index
    %21 = vector.load %arg4[%c0_9, %c0_10, %c0_11] : memref<1x16x512xf32, #tpu.memory_space<vmem>>, vector<1x16x512xf32>
    %22 = vector.shape_cast %21 : vector<1x16x512xf32> to vector<16x512xf32>
    %23 = vector.shape_cast %20 : vector<16x512xf32> to vector<1x16x512xf32>
    tpu.vector_store %arg4[%c0_9, %c0_10, %c0_11], %23 {strides = array<i32>} : memref<1x16x512xf32, #tpu.memory_space<vmem>>, vector<1x16x512xf32>,
    %c0_12 = arith.constant 0 : index
    %c0_13 = arith.constant 0 : index
    %c0_14 = arith.constant 0 : index
    %24 = vector.load %arg5[%c0_12, %c0_13, %c0_14] : memref<1x16x512xf32, #tpu.memory_space<vmem>>, vector<1x16x512xf32>
    %25 = vector.shape_cast %24 : vector<1x16x512xf32> to vector<16x512xf32>
    %26 = arith.addf %25, %17 : vector<16x512xf32>
    %c0_15 = arith.constant 0 : index
    %c0_16 = arith.constant 0 : index
    %c0_17 = arith.constant 0 : index
    %27 = vector.load %arg5[%c0_15, %c0_16, %c0_17] : memref<1x16x512xf32, #tpu.memory_space<vmem>>, vector<1x16x512xf32>
    %28 = vector.shape_cast %27 : vector<1x16x512xf32> to vector<16x512xf32>
    %29 = vector.shape_cast %26 : vector<16x512xf32> to vector<1x16x512xf32>
    tpu.vector_store %arg5[%c0_15, %c0_16, %c0_17], %29 {strides = array<i32>} : memref<1x16x512xf32, #tpu.memory_space<vmem>>, vector<1x16x512xf32>,
    return
  }
  func.func @transform_0(%arg0: i32, %arg1: i32) -> (i32, i32) {
    %c1_i32 = arith.constant 1 : i32
    %0 = arith.muli %arg0, %c1_i32 : i32
    %1 = arith.addi %0, %arg1 : i32
    %c0_i32 = arith.constant 0 : i32
    %c0_i32_0 = arith.constant 0 : i32
    return %c0_i32, %1 : i32, i32
  }
  func.func @transform_1(%arg0: i32, %arg1: i32) -> (i32, i32) {
    %c1_i32 = arith.constant 1 : i32
    %0 = arith.muli %arg0, %c1_i32 : i32
    %1 = arith.addi %0, %arg1 : i32
    %c0_i32 = arith.constant 0 : i32
    %c0_i32_0 = arith.constant 0 : i32
    return %c0_i32, %1 : i32, i32
  }
  func.func @transform_2(%arg0: i32, %arg1: i32) -> (i32, i32, i32) {
    %c0_i32 = arith.constant 0 : i32
    %c0_i32_0 = arith.constant 0 : i32
    %c0_i32_1 = arith.constant 0 : i32
    return %arg0, %c0_i32, %c0_i32_0 : i32, i32, i32
  }
  func.func @transform_3(%arg0: i32, %arg1: i32) -> (i32, i32, i32) {
    %c0_i32 = arith.constant 0 : i32
    %c0_i32_0 = arith.constant 0 : i32
    %c0_i32_1 = arith.constant 0 : i32
    return %arg0, %c0_i32, %c0_i32_0 : i32, i32, i32
  }
}

</mosaic_0001>

<llo_original>
// kernel: tpu_custom_call.1
$region0: #{tpu_custom_call.1}
  #allocation0 [shape = 'u32[]', space=smem, size = 0x4, offset = 0x4, fixed_abs, tag = 'smem constant byte address 0x4 - core index']
  #allocation1 [shape = 'u32[72,128]{1,0:T(1,128)}', space=vmem, size = 0x9000, scoped, tag = 'internal scratch']
  %s0 = inlined_call_operand.hbm [shape: f32[16,128], index: 0, kind: input, shape index: {}]
  %s1 = inlined_call_operand.hbm [shape: f32[16,128], index: 1, kind: input, shape index: {}]
  %s2 = inlined_call_operand.hbm [shape: f32[1,16,512], index: 2, kind: output, shape index: {0}]
  %s3 = inlined_call_operand.hbm [shape: f32[1,16,512], index: 3, kind: output, shape index: {1}]
  %4 = xla_tuple %s2, %s3
  %s5 = sld [smem:[#allocation0]]
  $region38: #{tpu_custom_call.1} parent=0
    _
  %s7 = ssub.s32 1, %s5
  %s8 = scalar_select 0, %s7, %s5
  $region1: #{tpu_custom_call.1} parent=0
    #allocation2 [shape = 'u8[32768]{0}', space=vmem, size = 0x8000, scoped, tag = 'input window, operand 0, single buffered']
    #allocation3 [shape = 's32[1]{0}', space=sflag, size = 0x4, scoped, tag = 'scoped memory for tpu_custom_call.1']
    #allocation4 [shape = 's32[1]{0}', space=sflag, size = 0x4, scoped, tag = 'scoped memory for tpu_custom_call.1']
    #allocation5 [shape = 'u8[32768]{0}', space=vmem, size = 0x8000, scoped, tag = 'input window, operand 1, single buffered']
    #allocation6 [shape = 's32[1]{0}', space=sflag, size = 0x4, scoped, tag = 'scoped memory for tpu_custom_call.1']
    #allocation7 [shape = 'u8[32768]{0}', space=vmem, size = 0x8000, scoped, tag = 'output window, operand 0, single buffered']
    #allocation8 [shape = 'u8[32768]{0}', space=vmem, size = 0x8000, scoped, tag = 'output window, operand 1, single buffered']
    #allocation9 [shape = 's32[1]{0}', space=sflag, size = 0x4, scoped, tag = 'scoped memory for tpu_custom_call.1']
    %9 = vsyncpa [#allocation3], 0
    %10 = vsyncpa [#allocation6], 0
    %11 = vsyncpa [#allocation4], 0
    %12 = vsyncpa [#allocation9], 0
    // Predicated region
    $region2: #{tpu_custom_call.1} parent=1 // pred_check
      _
    $region3: #{tpu_custom_call.1} parent=1 // pred_check_branch
      %14 = sbr.rel (0) target = $region5
    $region4: #{tpu_custom_call.1} parent=1 // pred_region
      %s15 = sadd.s32 0, 0
      %s16 = smul.u32 4, %s15
      %s17 = ssub.s32 1, %s16
      %s18 = smul.u32 16, %s17
      %s19 = ssub.s32 64, %s18
      %s20 = sshll.u32 %s19, 4
      %21 = vsyncadd [#allocation3], %s20
      %p22 = scmp.ne.s32.totalorder 0, %s18
      %s23 = smul.addr %s16, 8
      %s24 = scalar_lea.hbm %s0, %s23
      %s25 = smul.u32 %s17, 8
      %s26 = smul.u32 %s25, 2
      %s27 = sshll.u32 %s24, 4
      %s28 = int_to_ptr.hbm [resolvable:$true] %s27
      %s29 = sshll.u32 [#allocation2], 4
      %s30 = int_to_ptr.vmem [resolvable:$true] %s29
      %s31 = sshll.u32 %s26, 4
      %35 = dma.hbm_to_vmem [thread:$0]  (%p22), %s28, %s31, %s30, [#allocation3], 128, 512, %s25
    $region5: #{tpu_custom_call.1} parent=1 // pred_fallthru
      _
    // Predicated region
    $region6: #{tpu_custom_call.1} parent=1 // pred_check
      _
    $region7: #{tpu_custom_call.1} parent=1 // pred_check_branch
      %37 = sbr.rel (0) target = $region9
    $region8: #{tpu_custom_call.1} parent=1 // pred_region
      %s38 = sadd.s32 0, 0
      %s39 = smul.u32 4, %s38
      %s40 = ssub.s32 1, %s39
      %s41 = smul.u32 16, %s40
      %s42 = ssub.s32 64, %s41
      %s43 = sshll.u32 %s42, 4
      %44 = vsyncadd [#allocation6], %s43
      %p45 = scmp.ne.s32.totalorder 0, %s41
      %s46 = smul.addr %s39, 8
      %s47 = scalar_lea.hbm %s1, %s46
      %s48 = smul.u32 %s40, 8
      %s49 = smul.u32 %s48, 2
      %s50 = sshll.u32 %s47, 4
      %s51 = int_to_ptr.hbm [resolvable:$true] %s50
      %s52 = sshll.u32 [#allocation5], 4
      %s53 = int_to_ptr.vmem [resolvable:$true] %s52
      %s54 = sshll.u32 %s49, 4
      %58 = dma.hbm_to_vmem [thread:$0]  (%p45), %s51, %s54, %s53, [#allocation6], 128, 512, %s48
    $region9: #{tpu_custom_call.1} parent=1 // pred_fallthru
      _
    // Predicated region
    $region10: #{tpu_custom_call.1} parent=1 // pred_check
      _
    $region11: #{tpu_custom_call.1} parent=1 // pred_check_branch
      %60 = sbr.rel (0) target = $region13
    $region12: #{tpu_custom_call.1} parent=1 // pred_region
      %62 = dma.done [#allocation3], 1024
    $region13: #{tpu_custom_call.1} parent=1 // pred_fallthru
      _
    // Predicated region
    $region14: #{tpu_custom_call.1} parent=1 // pred_check
      _
    $region15: #{tpu_custom_call.1} parent=1 // pred_check_branch
      %64 = sbr.rel (0) target = $region17
    $region16: #{tpu_custom_call.1} parent=1 // pred_region
      %66 = dma.done [#allocation6], 1024
    $region17: #{tpu_custom_call.1} parent=1 // pred_fallthru
      _
    %s67 = sadd.s32 0, 0
    %s68 = smul.u32 4, %s67
    %s69 = ssub.s32 1, %s68
    %s70 = smul.u32 16, %s69
    %s71 = sadd.s32 0, 0
    %s72 = smul.u32 4, %s71
    %s73 = ssub.s32 1, %s72
    %s74 = smul.u32 16, %s73
    %p75 = scmp.eq.s32.totalorder 0, 0
    // Predicated region
    $region18: #{tpu_custom_call.1} parent=1 // pred_check
      %p76 = pneg %p75
    $region19: #{tpu_custom_call.1} parent=1 // pred_check_branch
      %78 = sbr.rel (%p76) target = $region21
    $region20: #{tpu_custom_call.1} parent=1 // pred_region
      %79 = vst [vmem:[#allocation7] sm:$0xff] 0.0
      %80 = vst [vmem:[#allocation7 + $0x8] sm:$0xff] 0.0
      %81 = vst [vmem:[#allocation7 + $0x10] sm:$0xff] 0.0
      %82 = vst [vmem:[#allocation7 + $0x18] sm:$0xff] 0.0
      %83 = vst [vmem:[#allocation7 + $0x20] sm:$0xff] 0.0
      %84 = vst [vmem:[#allocation7 + $0x28] sm:$0xff] 0.0
      %85 = vst [vmem:[#allocation7 + $0x30] sm:$0xff] 0.0
      %86 = vst [vmem:[#allocation7 + $0x38] sm:$0xff] 0.0
      %87 = vst [vmem:[#allocation8] sm:$0xff] 0.0
      %88 = vst [vmem:[#allocation8 + $0x8] sm:$0xff] 0.0
      %89 = vst [vmem:[#allocation8 + $0x10] sm:$0xff] 0.0
      %90 = vst [vmem:[#allocation8 + $0x18] sm:$0xff] 0.0
      %91 = vst [vmem:[#allocation8 + $0x20] sm:$0xff] 0.0
      %92 = vst [vmem:[#allocation8 + $0x28] sm:$0xff] 0.0
      %93 = vst [vmem:[#allocation8 + $0x30] sm:$0xff] 0.0
      %94 = vst [vmem:[#allocation8 + $0x38] sm:$0xff] 0.0
    $region21: #{tpu_custom_call.1} parent=1 // pred_fallthru
      _
    %s95 = sadd.s32 0, 0
    %s96 = smul.u32 %s95, 512
    %v97 = vlaneseq
    %v98 = vand.u32 %v97, 127
    %v99 = vadd.s32 %v98, 128
    %v100 = vadd.s32 %v98, 256
    %v101 = vadd.s32 %v98, 384
    %v102 = vld [vmem:[#allocation2] sm:$0xff]
    %v103 = vld [vmem:[#allocation2 + $0x8] sm:$0xff]
    %v104 = vld [vmem:[#allocation2 + $0x10] sm:$0xff]
    %v105 = vld [vmem:[#allocation2 + $0x18] sm:$0xff]
    %v106 = vld [vmem:[#allocation2 + $0x20] sm:$0xff]
    %v107 = vld [vmem:[#allocation2 + $0x28] sm:$0xff]
    %v108 = vld [vmem:[#allocation2 + $0x30] sm:$0xff]
    %v109 = vld [vmem:[#allocation2 + $0x38] sm:$0xff]
    %v110 = vld [vmem:[#allocation5] sm:$0xff]
    %v111 = vld [vmem:[#allocation5 + $0x8] sm:$0xff]
    %v112 = vld [vmem:[#allocation5 + $0x10] sm:$0xff]
    %v113 = vld [vmem:[#allocation5 + $0x18] sm:$0xff]
    %v114 = vld [vmem:[#allocation5 + $0x20] sm:$0xff]
    %v115 = vld [vmem:[#allocation5 + $0x28] sm:$0xff]
    %v116 = vld [vmem:[#allocation5 + $0x30] sm:$0xff]
    %v117 = vld [vmem:[#allocation5 + $0x38] sm:$0xff]
    %v118 = vstv %s96
    %v119 = vadd.s32 %v98, %v118
    %v120 = vadd.s32 %v99, %v118
    %v121 = vadd.s32 %v100, %v118
    %v122 = vadd.s32 %v101, %v118
    %vm123 = vcmp.lt.s32.totalorder %v119, 128
    %vm124 = vcmp.lt.s32.totalorder %v120, 128
    %vm125 = vcmp.lt.s32.totalorder %v121, 128
    %vm126 = vcmp.lt.s32.totalorder %v122, 128
    %v127 = vsel %vm123, %v102, 0.0
    %v128 = vsel %vm124, %v103, 0.0
    %v129 = vsel %vm125, %v104, 0.0
    %v130 = vsel %vm126, %v105, 0.0
    %v131 = vsel %vm123, %v106, 0.0
    %v132 = vsel %vm124, %v107, 0.0
    %v133 = vsel %vm125, %v108, 0.0
    %v134 = vsel %vm126, %v109, 0.0
    %v135 = vsel %vm123, %v110, 0.0
    %v136 = vsel %vm124, %v111, 0.0
    %v137 = vsel %vm125, %v112, 0.0
    %v138 = vsel %vm126, %v113, 0.0
    %v139 = vsel %vm123, %v114, 0.0
    %v140 = vsel %vm124, %v115, 0.0
    %v141 = vsel %vm125, %v116, 0.0
    %v142 = vsel %vm126, %v117, 0.0
    %v143 = vld [vmem:[#allocation7] sm:$0xff]
    %v144 = vld [vmem:[#allocation7 + $0x8] sm:$0xff]
    %v145 = vld [vmem:[#allocation7 + $0x10] sm:$0xff]
    %v146 = vld [vmem:[#allocation7 + $0x18] sm:$0xff]
    %v147 = vld [vmem:[#allocation7 + $0x20] sm:$0xff]
    %v148 = vld [vmem:[#allocation7 + $0x28] sm:$0xff]
    %v149 = vld [vmem:[#allocation7 + $0x30] sm:$0xff]
    %v150 = vld [vmem:[#allocation7 + $0x38] sm:$0xff]
    %v151 = vadd.f32 %v143, %v127
    %v152 = vadd.f32 %v144, %v128
    %v153 = vadd.f32 %v145, %v129
    %v154 = vadd.f32 %v146, %v130
    %v155 = vadd.f32 %v147, %v131
    %v156 = vadd.f32 %v148, %v132
    %v157 = vadd.f32 %v149, %v133
    %v158 = vadd.f32 %v150, %v134
    %159 = vst [vmem:[#allocation7] sm:$0xff] %v151
    %160 = vst [vmem:[#allocation7 + $0x8] sm:$0xff] %v152
    %161 = vst [vmem:[#allocation7 + $0x10] sm:$0xff] %v153
    %162 = vst [vmem:[#allocation7 + $0x18] sm:$0xff] %v154
    %163 = vst [vmem:[#allocation7 + $0x20] sm:$0xff] %v155
    %164 = vst [vmem:[#allocation7 + $0x28] sm:$0xff] %v156
    %165 = vst [vmem:[#allocation7 + $0x30] sm:$0xff] %v157
    %166 = vst [vmem:[#allocation7 + $0x38] sm:$0xff] %v158
    %v167 = vld [vmem:[#allocation8] sm:$0xff]
    %v168 = vld [vmem:[#allocation8 + $0x8] sm:$0xff]
    %v169 = vld [vmem:[#allocation8 + $0x10] sm:$0xff]
    %v170 = vld [vmem:[#allocation8 + $0x18] sm:$0xff]
    %v171 = vld [vmem:[#allocation8 + $0x20] sm:$0xff]
    %v172 = vld [vmem:[#allocation8 + $0x28] sm:$0xff]
    %v173 = vld [vmem:[#allocation8 + $0x30] sm:$0xff]
    %v174 = vld [vmem:[#allocation8 + $0x38] sm:$0xff]
    %v175 = vadd.f32 %v167, %v135
    %v176 = vadd.f32 %v168, %v136
    %v177 = vadd.f32 %v169, %v137
    %v178 = vadd.f32 %v170, %v138
    %v179 = vadd.f32 %v171, %v139
    %v180 = vadd.f32 %v172, %v140
    %v181 = vadd.f32 %v173, %v141
    %v182 = vadd.f32 %v174, %v142
    %183 = vst [vmem:[#allocation8] sm:$0xff] %v175
    %184 = vst [vmem:[#allocation8 + $0x8] sm:$0xff] %v176
    %185 = vst [vmem:[#allocation8 + $0x10] sm:$0xff] %v177
    %186 = vst [vmem:[#allocation8 + $0x18] sm:$0xff] %v178
    %187 = vst [vmem:[#allocation8 + $0x20] sm:$0xff] %v179
    %188 = vst [vmem:[#allocation8 + $0x28] sm:$0xff] %v180
    %189 = vst [vmem:[#allocation8 + $0x30] sm:$0xff] %v181
    %190 = vst [vmem:[#allocation8 + $0x38] sm:$0xff] %v182
    // Predicated region
    $region22: #{tpu_custom_call.1} parent=1 // pred_check
      _
    $region23: #{tpu_custom_call.1} parent=1 // pred_check_branch
      %192 = sbr.rel (0) target = $region25
    $region24: #{tpu_custom_call.1} parent=1 // pred_region
      %194 = vsyncadd [#allocation4], 0
      %s195 = sshll.u32 [#allocation7], 4
      %s196 = int_to_ptr.vmem [resolvable:$true] %s195
      %s197 = sshll.u32 %s2, 4
      %s198 = int_to_ptr.hbm [resolvable:$true] %s197
      %203 = dma.vmem_to_hbm [thread:$0]  %s196, 1024, %s198, [#allocation4], 512, 512, 32
    $region25: #{tpu_custom_call.1} parent=1 // pred_fallthru
      _
    // Predicated region
    $region26: #{tpu_custom_call.1} parent=1 // pred_check
      _
    $region27: #{tpu_custom_call.1} parent=1 // pred_check_branch
      %205 = sbr.rel (0) target = $region29
    $region28: #{tpu_custom_call.1} parent=1 // pred_region
      %207 = vsyncadd [#allocation9], 0
      %s208 = sshll.u32 [#allocation8], 4
      %s209 = int_to_ptr.vmem [resolvable:$true] %s208
      %s210 = sshll.u32 %s3, 4
      %s211 = int_to_ptr.hbm [resolvable:$true] %s210
      %216 = dma.vmem_to_hbm [thread:$0]  %s209, 1024, %s211, [#allocation9], 512, 512, 32
    $region29: #{tpu_custom_call.1} parent=1 // pred_fallthru
      _
    // Predicated region
    $region30: #{tpu_custom_call.1} parent=1 // pred_check
      _
    $region31: #{tpu_custom_call.1} parent=1 // pred_check_branch
      %218 = sbr.rel (0) target = $region33
    $region32: #{tpu_custom_call.1} parent=1 // pred_region
      %220 = dma.done [#allocation4], 1024
    $region33: #{tpu_custom_call.1} parent=1 // pred_fallthru
      _
    // Predicated region
    $region34: #{tpu_custom_call.1} parent=1 // pred_check
      _
    $region35: #{tpu_custom_call.1} parent=1 // pred_check_branch
      %222 = sbr.rel (0) target = $region37
    $region36: #{tpu_custom_call.1} parent=1 // pred_region
      %224 = dma.done [#allocation9], 1024
    $region37: #{tpu_custom_call.1} parent=1 // pred_fallthru
      _
    %225 = vsyncpa [#allocation3], 1
    %226 = vsyncpa [#allocation6], 1
    %227 = vsyncpa [#allocation4], 1
    %228 = vsyncpa [#allocation9], 1

</llo_original>
